<compile_context>
chip_gen: v7x
topology: tpu7x:2x2x1
jax: 0.10.0
libtpu: 0.0.40
codegen_flags: <defaults>
</compile_context>

<pallas_src>
import functools
import math

import jax
import jax.numpy as jnp
from jax import lax
from jax.experimental import pallas as pl
from jax.experimental.pallas import tpu as pltpu


_TARGET_BLOCK_ELEMS = 1 << 19   # ~2 MiB of f32 per buffer per pipeline stage
_MIN_TILES = 4                  # >=2 tiles per TensorCore on v7x megacore
_SUBLANE = 32                   # row-tile multiple legal for f32/bf16/8-bit


def _i32(pattern: int) -> int:
    """Reinterpret a 32-bit hex pattern as a signed int32 Python int."""
    pattern &= 0xFFFFFFFF
    return pattern - (1 << 32) if pattern >= (1 << 31) else pattern


def _shr(x, k: int):
    """Logical (unsigned) right shift on int32 values."""
    return lax.shift_right_logical(x, jnp.int32(k))


def _round_up(a: int, b: int) -> int:
    return -(-a // b) * b


def _gaussian_noise_kernel(seed_ref, x_ref, o_ref, *, scale, compute_dtype):
    # ---- per-tile scalar key (scalar unit, once per tile: essentially free).
    # Strong mixing here means the per-element vector mixer below can be short.
    seed = seed_ref[0]
    tile = pl.program_id(0)
    key = seed * jnp.int32(_i32(0x9E3779B9)) + tile * jnp.int32(_i32(0x85EBCA6B))
    key = key ^ _shr(key, 16)
    key = key * jnp.int32(_i32(0x7FEB352D))
    key = key ^ _shr(key, 15)

    # ---- per-element counter, local to this tile (key decorrelates tiles).
    br, bc = x_ref.shape
    shift = int(math.log2(bc))                     # bc is always a power of 2
    row = lax.broadcasted_iota(jnp.int32, (br, bc), 0)
    col = lax.broadcasted_iota(jnp.int32, (br, bc), 1)
    ctr = (row << shift) + col

    # ---- two-multiply mixer: low counter bits -> well-mixed HIGH bits.
    # We only consume the top 23 bits, so the usual leading/trailing xor-shrs
    # of a full finalizer are dead work and were dropped.
    # NOTE: relies on wrapping int32 multiply semantics (holds on XLA/Mosaic).
    h = ctr ^ key
    h = h * jnp.int32(_i32(0xCC9E2D51))
    h = h ^ _shr(h, 15)
    h = h * jnp.int32(_i32(0x846CA68B))

    # ---- top 23 bits -> uniform x_u in (-1, 1), endpoints never hit exactly.
    bits = _shr(h, 9).astype(jnp.float32)
    x_u = bits * jnp.float32(1.0 / (1 << 22)) - jnp.float32(1.0 - 1.0 / (1 << 23))

    # ---- standard normal via inverse CDF: z = sqrt(2) * erfinv(x_u).
    # Clamp w so only the central (w < 5) branch of Giles' erfinv is needed;
    # this truncates |z| at ~2.8 sigma (<0.6% of mass) -- fine for noise.
    w = -jnp.log((1.0 - x_u) * (1.0 + x_u))
    w = jnp.minimum(w, 4.5)
    wc = (w - 2.5).astype(compute_dtype)
    xc = x_u.astype(compute_dtype)

    p = jnp.asarray(2.1858087e-04, compute_dtype)
    p = p * wc + jnp.asarray(-1.25372503e-03, compute_dtype)
    p = p * wc + jnp.asarray(-4.17768164e-03, compute_dtype)
    p = p * wc + jnp.asarray(2.46640727e-01, compute_dtype)
    p = p * wc + jnp.asarray(1.50140941e+00, compute_dtype)

    noise = (jnp.asarray(scale, compute_dtype) * xc) * p      # scale = sqrt(2)*std
    o_ref[...] = (x_ref[...].astype(compute_dtype) + noise).astype(o_ref.dtype)


def gaussian_noise(x, seed, *, std=0.1, training=True):
    """Pallas forward pass of GaussianNoise: x + N(0, std^2) when training.

    `std` and `training` must be static Python values (they are plain module
    attributes in the PyTorch reference, not tensors).
    # TODO(synk): decay_step() is host-side module state; call sites pass the
    # decayed std explicitly.
    """
    if not training or std <= 0.0:
        return x    # eval mode / fully decayed std -> identity

    orig_shape = x.shape
    total = int(x.size)

    # Lane width: widest of {1024,...,128} dividing the element count, so the
    # common case needs no wrapper-side pad/slice (each would be an extra HBM
    # read+write pass).  Ragged counts fall back to a small pad at 128 lanes.
    lanes = next((c for c in (1024, 512, 256, 128) if total % c == 0), None)
    flat = x.reshape(-1)
    if lanes is None:
        lanes = 128
        rows = -(-total // lanes)
        flat = jnp.pad(flat, (0, rows * lanes - total))
    else:
        rows = total // lanes
    x2 = flat.reshape(rows, lanes)

    # Row tile: ~2 MiB f32 buffers max, but at least _MIN_TILES grid steps for
    # medium/large inputs so v7x can shard the "parallel" axis over both TCs.
    if rows <= 2 * _SUBLANE:
        br = rows                                   # full extent (always legal)
    else:
        br_cap = max(_SUBLANE, _TARGET_BLOCK_ELEMS // lanes)
        br = min(br_cap, _round_up(-(-rows // _MIN_TILES), _SUBLANE), rows)
    grid = (-(-rows // br),)

    compute_dtype = jnp.bfloat16 if x.dtype == jnp.bfloat16 else jnp.float32
    kernel = functools.partial(
        _gaussian_noise_kernel,
        scale=float(std) * math.sqrt(2.0),
        compute_dtype=compute_dtype)

    seed_arr = jnp.asarray([seed], dtype=jnp.int32)
    out2 = pl.pallas_call(
        kernel,
        out_shape=jax.ShapeDtypeStruct((rows, lanes), x.dtype),
        grid_spec=pltpu.PrefetchScalarGridSpec(
            num_scalar_prefetch=1,
            grid=grid,
            in_specs=[pl.BlockSpec((br, lanes), lambda i, s: (i, 0))],
            out_specs=pl.BlockSpec((br, lanes), lambda i, s: (i, 0)),
        ),
        compiler_params=pltpu.CompilerParams(
            # Counter-based per-tile streams -> safe to shard the grid across
            # both TensorCores on v7x; no-op on single-TC v5e/v6e.
            dimension_semantics=("parallel",),
            vmem_limit_bytes=32 * 1024 * 1024,
        ),
    )(seed_arr, x2)

    out_flat = out2.reshape(-1)
    if out_flat.size != total:
        out_flat = out_flat[:total]
    return out_flat.reshape(orig_shape)


if __name__ == "__main__":
    key = jax.random.PRNGKey(0)
    x = jax.random.normal(key, (2, 4, 16, 16), dtype=jnp.float32)

    # Training path: additive Gaussian noise with std=0.1.
    y_train = jax.block_until_ready(gaussian_noise(x, seed=1234, std=0.1, training=True))
    # Eval path: identity.
    y_eval = jax.block_until_ready(gaussian_noise(x, seed=1234, std=0.1, training=False))

    assert y_train.shape == x.shape and y_train.dtype == x.dtype
    assert bool(jnp.all(jnp.isfinite(y_train)))
    assert bool(jnp.allclose(y_eval, x))

    # Noise actually added, roughly the right magnitude, ~zero mean.
    diff = (y_train - x).reshape(-1)
    assert float(jnp.max(jnp.abs(diff))) > 0.0
    assert 0.05 < float(jnp.std(diff)) < 0.2
    assert abs(float(jnp.mean(diff))) < 0.03

    # Deterministic for a given seed; different seed -> different noise.
    y_repeat = jax.block_until_ready(gaussian_noise(x, seed=1234, std=0.1, training=True))
    y_other = jax.block_until_ready(gaussian_noise(x, seed=99, std=0.1, training=True))
    assert bool(jnp.allclose(y_train, y_repeat))
    assert float(jnp.max(jnp.abs(y_train - y_other))) > 0.0

    # Multi-tile grid (600 rows -> 4 tiles of 160) + ragged final row block.
    xl = jax.random.normal(jax.random.PRNGKey(1), (6, 4, 160, 160), dtype=jnp.float32)
    yl = jax.block_until_ready(gaussian_noise(xl, seed=7, std=0.1, training=True))
    dl = (yl - xl).reshape(-1)
    assert bool(jnp.all(jnp.isfinite(yl)))
    assert 0.05 < float(jnp.std(dl)) < 0.2
    assert abs(float(jnp.mean(dl))) < 0.03

    # Adaptive lane width (1536 elems -> 512 lanes, no pad / no slice).
    xm = jax.random.normal(jax.random.PRNGKey(2), (2, 4, 16, 12), dtype=jnp.float32)
    ym = jax.block_until_ready(gaussian_noise(xm, seed=3, std=0.1, training=True))
    assert ym.shape == xm.shape and bool(jnp.all(jnp.isfinite(ym)))
    assert 0.05 < float(jnp.std(ym - xm)) < 0.2

    # Ragged fallback path (1000 elems, not divisible by 128).
    xr = jax.random.normal(jax.random.PRNGKey(3), (10, 100), dtype=jnp.float32)
    yr = jax.block_until_ready(gaussian_noise(xr, seed=5, std=0.1, training=True))
    assert yr.shape == xr.shape and bool(jnp.all(jnp.isfinite(yr)))
    assert 0.05 < float(jnp.std(yr - xr)) < 0.2

    # bf16 fast path (noise math in bf16 -> 2x VPU throughput on v6e/v7x).
    xb = jax.random.normal(jax.random.PRNGKey(4), (2, 4, 32, 32), dtype=jnp.bfloat16)
    yb = jax.block_until_ready(gaussian_noise(xb, seed=11, std=0.1, training=True))
    db = (yb.astype(jnp.float32) - xb.astype(jnp.float32)).reshape(-1)
    assert yb.shape == xb.shape and yb.dtype == jnp.bfloat16
    assert bool(jnp.all(jnp.isfinite(yb.astype(jnp.float32))))
    assert 0.05 < float(jnp.std(db)) < 0.2

    print("KERNEL_OK")
</pallas_src>

<mosaic_0001>
module attributes {stable_mosaic.version = 11 : i64} {
  func.func @_gaussian_noise_kernel(%arg0: i32, %arg1: memref<1xi32, #tpu.memory_space<smem>>, %arg2: memref<2x1024xf32, #tpu.memory_space<vmem>>, %arg3: memref<2x1024xf32, #tpu.memory_space<vmem>>) attributes {dimension_semantics = [#tpu.dimension_semantics<parallel>], iteration_bounds = array<i64: 1>, scalar_prefetch = 1 : i64, scratch_operands = 0 : i64, tpu.core_type = #tpu.core_type<tc>, window_params = [{transform_indices = @transform_0, window_bounds = array<i64: 2, 1024>}, {transform_indices = @transform_1, window_bounds = array<i64: 2, 1024>}]} {
    %c0 = arith.constant 0 : index
    %0 = memref.load %arg1[%c0] : memref<1xi32, #tpu.memory_space<smem>>
    %c-1640531527_i32 = arith.constant -1640531527 : i32
    %1 = arith.muli %0, %c-1640531527_i32 : i32
    %c-2048144789_i32 = arith.constant -2048144789 : i32
    %2 = arith.muli %arg0, %c-2048144789_i32 : i32
    %3 = arith.addi %1, %2 : i32
    %c16_i32 = arith.constant 16 : i32
    %4 = arith.shrui %3, %c16_i32 : i32
    %5 = arith.xori %3, %4 : i32
    %c2146121005_i32 = arith.constant 2146121005 : i32
    %6 = arith.muli %5, %c2146121005_i32 : i32
    %c15_i32 = arith.constant 15 : i32
    %7 = arith.shrui %6, %c15_i32 : i32
    %8 = arith.xori %6, %7 : i32
    %9 = tpu.iota {dimensions = array<i32: 0>} : vector<2x1024xi32>
    %10 = tpu.iota {dimensions = array<i32: 1>} : vector<2x1024xi32>
    %c10_i32 = arith.constant 10 : i32
    %11 = vector.broadcast %c10_i32 : i32 to vector<2x1024xi32>
    %12 = arith.shli %9, %11 : vector<2x1024xi32>
    %13 = arith.addi %12, %10 : vector<2x1024xi32>
    %14 = vector.broadcast %8 : i32 to vector<2x1024xi32>
    %15 = arith.xori %13, %14 : vector<2x1024xi32>
    %c-862048943_i32 = arith.constant -862048943 : i32
    %16 = vector.broadcast %c-862048943_i32 : i32 to vector<2x1024xi32>
    %17 = arith.muli %15, %16 : vector<2x1024xi32>
    %c15_i32_0 = arith.constant 15 : i32
    %18 = vector.broadcast %c15_i32_0 : i32 to vector<2x1024xi32>
    %19 = arith.shrui %17, %18 : vector<2x1024xi32>
    %20 = arith.xori %17, %19 : vector<2x1024xi32>
    %c-2073254261_i32 = arith.constant -2073254261 : i32
    %21 = vector.broadcast %c-2073254261_i32 : i32 to vector<2x1024xi32>
    %22 = arith.muli %20, %21 : vector<2x1024xi32>
    %c9_i32 = arith.constant 9 : i32
    %23 = vector.broadcast %c9_i32 : i32 to vector<2x1024xi32>
    %24 = arith.shrui %22, %23 : vector<2x1024xi32>
    %25 = arith.sitofp %24 : vector<2x1024xi32> to vector<2x1024xf32>
    %cst = arith.constant 2.38418579E-7 : f32
    %26 = vector.broadcast %cst : f32 to vector<2x1024xf32>
    %27 = arith.mulf %25, %26 : vector<2x1024xf32>
    %cst_1 = arith.constant 0.99999988 : f32
    %28 = vector.broadcast %cst_1 : f32 to vector<2x1024xf32>
    %29 = arith.subf %27, %28 : vector<2x1024xf32>
    %cst_2 = arith.constant 1.000000e+00 : f32
    %30 = vector.broadcast %cst_2 : f32 to vector<2x1024xf32>
    %31 = arith.subf %30, %29 : vector<2x1024xf32>
    %cst_3 = arith.constant 1.000000e+00 : f32
    %32 = vector.broadcast %cst_3 : f32 to vector<2x1024xf32>
    %33 = arith.addf %32, %29 : vector<2x1024xf32>
    %34 = arith.mulf %31, %33 : vector<2x1024xf32>
    %35 = math.log %34 : vector<2x1024xf32>
    %cst_4 = arith.constant 0.000000e+00 : f32
    %36 = vector.broadcast %cst_4 : f32 to vector<2x1024xf32>
    %37 = arith.subf %36, %35 : vector<2x1024xf32>
    %cst_5 = arith.constant 4.500000e+00 : f32
    %38 = vector.broadcast %cst_5 : f32 to vector<2x1024xf32>
    %39 = arith.minimumf %37, %38 : vector<2x1024xf32>
    %cst_6 = arith.constant 2.500000e+00 : f32
    %40 = vector.broadcast %cst_6 : f32 to vector<2x1024xf32>
    %41 = arith.subf %39, %40 : vector<2x1024xf32>
    %cst_7 = arith.constant 2.1858087E-4 : f32
    %42 = vector.broadcast %cst_7 : f32 to vector<2x1024xf32>
    %43 = arith.mulf %42, %41 : vector<2x1024xf32>
    %cst_8 = arith.constant -0.00125372503 : f32
    %44 = vector.broadcast %cst_8 : f32 to vector<2x1024xf32>
    %45 = arith.addf %43, %44 : vector<2x1024xf32>
    %46 = arith.mulf %45, %41 : vector<2x1024xf32>
    %cst_9 = arith.constant -0.00417768164 : f32
    %47 = vector.broadcast %cst_9 : f32 to vector<2x1024xf32>
    %48 = arith.addf %46, %47 : vector<2x1024xf32>
    %49 = arith.mulf %48, %41 : vector<2x1024xf32>
    %cst_10 = arith.constant 0.246640727 : f32
    %50 = vector.broadcast %cst_10 : f32 to vector<2x1024xf32>
    %51 = arith.addf %49, %50 : vector<2x1024xf32>
    %52 = arith.mulf %51, %41 : vector<2x1024xf32>
    %cst_11 = arith.constant 1.50140941 : f32
    %53 = vector.broadcast %cst_11 : f32 to vector<2x1024xf32>
    %54 = arith.addf %52, %53 : vector<2x1024xf32>
    %cst_12 = arith.constant 0.141421363 : f32
    %55 = vector.broadcast %cst_12 : f32 to vector<2x1024xf32>
    %56 = arith.mulf %55, %29 : vector<2x1024xf32>
    %57 = arith.mulf %56, %54 : vector<2x1024xf32>
    %c0_13 = arith.constant 0 : index
    %c0_14 = arith.constant 0 : index
    %58 = vector.load %arg2[%c0_13, %c0_14] : memref<2x1024xf32, #tpu.memory_space<vmem>>, vector<2x1024xf32>
    %59 = arith.addf %58, %57 : vector<2x1024xf32>
    %c0_15 = arith.constant 0 : index
    %c0_16 = arith.constant 0 : index
    %60 = vector.load %arg3[%c0_15, %c0_16] : memref<2x1024xf32, #tpu.memory_space<vmem>>, vector<2x1024xf32>
    tpu.vector_store %arg3[%c0_15, %c0_16], %59 {strides = array<i32>} : memref<2x1024xf32, #tpu.memory_space<vmem>>, vector<2x1024xf32>,
    return
  }
  func.func @transform_0(%arg0: i32, %arg1: memref<1xi32, #tpu.memory_space<smem>>) -> (i32, i32) {
    %c0_i32 = arith.constant 0 : i32
    %c0_i32_0 = arith.constant 0 : i32
    return %arg0, %c0_i32 : i32, i32
  }
  func.func @transform_1(%arg0: i32, %arg1: memref<1xi32, #tpu.memory_space<smem>>) -> (i32, i32) {
    %c0_i32 = arith.constant 0 : i32
    %c0_i32_0 = arith.constant 0 : i32
    return %arg0, %c0_i32 : i32, i32
  }
}

</mosaic_0001>

<llo_original>
// kernel: tpu_custom_call.1
$region0: #{tpu_custom_call.1}
  #allocation0 [shape = 'u32[]', space=smem, size = 0x4, offset = 0x4, fixed_abs, tag = 'smem constant byte address 0x4 - core index']
  #allocation1 [shape = 'u32[144,128]{1,0:T(1,128)}', space=vmem, size = 0x12000, scoped, tag = 'internal scratch']
  #allocation2 [shape = 's32[1]{0}', space=sflag, size = 0x4, scoped, tag = 'scoped memory for tpu_custom_call.1']
  #allocation3 [shape = 's32[1]{0:T(128)S(6)}', space=smem, size = 0x200, scoped, tag = 'prefetched SMEM operand 0']
  %s0 = inlined_call_operand.<no memory space> [shape: s32[1], index: 0, kind: input, shape index: {}]
  %s1 = inlined_call_operand.hbm [shape: f32[2,1024], index: 1, kind: input, shape index: {}]
  %s2 = inlined_call_operand.hbm [shape: f32[2,1024], index: 2, kind: output, shape index: {}]
  %s3 = sld [smem:[#allocation0]]
  $region18: #{tpu_custom_call.1} parent=0
    _
  %s5 = ssub.s32 1, %s3
  %s6 = scalar_select 0, %s5, %s3
  %7 = sst [smem:[#allocation3]] %s0
  $region1: #{tpu_custom_call.1} parent=0
    #allocation4 [shape = 'u8[8192]{0}', space=vmem, size = 0x2000, scoped, tag = 'input window, operand 1, single buffered']
    #allocation5 [shape = 's32[1]{0}', space=sflag, size = 0x4, scoped, tag = 'scoped memory for tpu_custom_call.1']
    #allocation6 [shape = 's32[1]{0}', space=sflag, size = 0x4, scoped, tag = 'scoped memory for tpu_custom_call.1']
    #allocation7 [shape = 'u8[8192]{0}', space=vmem, size = 0x2000, scoped, tag = 'output window, operand 0, single buffered']
    %8 = vsyncpa [#allocation5], 0
    %9 = vsyncpa [#allocation6], 0
    // Predicated region
    $region2: #{tpu_custom_call.1} parent=1 // pred_check
      _
    $region3: #{tpu_custom_call.1} parent=1 // pred_check_branch
      %11 = sbr.rel (0) target = $region5
    $region4: #{tpu_custom_call.1} parent=1 // pred_region
      %s13 = ssub.s32 256, 256
      %14 = vsyncadd [#allocation5], %s13
      %s16 = sshll.u32 [#allocation4], 4
      %s17 = int_to_ptr.vmem [resolvable:$true] %s16
      %19 = dma.hbm_to_vmem [thread:$0]  %s1, 256, %s17, [#allocation5]
    $region5: #{tpu_custom_call.1} parent=1 // pred_fallthru
      _
    // Predicated region
    $region6: #{tpu_custom_call.1} parent=1 // pred_check
      _
    $region7: #{tpu_custom_call.1} parent=1 // pred_check_branch
      %21 = sbr.rel (0) target = $region9
    $region8: #{tpu_custom_call.1} parent=1 // pred_region
      %22 = dma.done [#allocation5], 256
    $region9: #{tpu_custom_call.1} parent=1 // pred_fallthru
      _
    %s23 = sld [smem:[#allocation3]]
    %s24 = smul.u32 %s23, 2654435769
    %s25 = smul.u32 0, 2246822507
    %s26 = sadd.s32 %s24, %s25
    %s27 = sshrl.u32 %s26, 16
    %s28 = sxor.u32 %s26, %s27
    %s29 = smul.u32 %s28, 2146121005
    %s30 = sshrl.u32 %s29, 15
    %s31 = sxor.u32 %s29, %s30
    %v32 = vlaneseq
    %v33 = vshrl.u32 %v32, 7
    %v34 = vlaneseq
    %v35 = vand.u32 %v34, 127
    %v36 = vadd.s32 %v35, 128
    %v37 = vadd.s32 %v35, 256
    %v38 = vadd.s32 %v35, 384
    %v39 = vadd.s32 %v35, 512
    %v40 = vadd.s32 %v35, 640
    %v41 = vadd.s32 %v35, 768
    %v42 = vadd.s32 %v35, 896
    %v43 = vshll.u32 %v33, 10
    %v44 = vadd.s32 %v43, %v35
    %v45 = vadd.s32 %v43, %v36
    %v46 = vadd.s32 %v43, %v37
    %v47 = vadd.s32 %v43, %v38
    %v48 = vadd.s32 %v43, %v39
    %v49 = vadd.s32 %v43, %v40
    %v50 = vadd.s32 %v43, %v41
    %v51 = vadd.s32 %v43, %v42
    %v52 = vstv %s31
    %v53 = vxor.u32 %v44, %v52
    %v54 = vxor.u32 %v45, %v52
    %v55 = vxor.u32 %v46, %v52
    %v56 = vxor.u32 %v47, %v52
    %v57 = vxor.u32 %v48, %v52
    %v58 = vxor.u32 %v49, %v52
    %v59 = vxor.u32 %v50, %v52
    %v60 = vxor.u32 %v51, %v52
    %v61 = vmul.u32 %v53, 3432918353
    %v62 = vmul.u32 %v54, 3432918353
    %v63 = vmul.u32 %v55, 3432918353
    %v64 = vmul.u32 %v56, 3432918353
    %v65 = vmul.u32 %v57, 3432918353
    %v66 = vmul.u32 %v58, 3432918353
    %v67 = vmul.u32 %v59, 3432918353
    %v68 = vmul.u32 %v60, 3432918353
    %v69 = vshrl.u32 %v61, 15
    %v70 = vshrl.u32 %v62, 15
    %v71 = vshrl.u32 %v63, 15
    %v72 = vshrl.u32 %v64, 15
    %v73 = vshrl.u32 %v65, 15
    %v74 = vshrl.u32 %v66, 15
    %v75 = vshrl.u32 %v67, 15
    %v76 = vshrl.u32 %v68, 15
    %v77 = vxor.u32 %v61, %v69
    %v78 = vxor.u32 %v62, %v70
    %v79 = vxor.u32 %v63, %v71
    %v80 = vxor.u32 %v64, %v72
    %v81 = vxor.u32 %v65, %v73
    %v82 = vxor.u32 %v66, %v74
    %v83 = vxor.u32 %v67, %v75
    %v84 = vxor.u32 %v68, %v76
    %v85 = vmul.u32 %v77, 2221713035
    %v86 = vmul.u32 %v78, 2221713035
    %v87 = vmul.u32 %v79, 2221713035
    %v88 = vmul.u32 %v80, 2221713035
    %v89 = vmul.u32 %v81, 2221713035
    %v90 = vmul.u32 %v82, 2221713035
    %v91 = vmul.u32 %v83, 2221713035
    %v92 = vmul.u32 %v84, 2221713035
    %v93 = vshrl.u32 %v85, 9
    %v94 = vshrl.u32 %v86, 9
    %v95 = vshrl.u32 %v87, 9
    %v96 = vshrl.u32 %v88, 9
    %v97 = vshrl.u32 %v89, 9
    %v98 = vshrl.u32 %v90, 9
    %v99 = vshrl.u32 %v91, 9
    %v100 = vshrl.u32 %v92, 9
    %v101 = vcvt.s32.f32 %v93
    %v102 = vcvt.s32.f32 %v94
    %v103 = vcvt.s32.f32 %v95
    %v104 = vcvt.s32.f32 %v96
    %v105 = vcvt.s32.f32 %v97
    %v106 = vcvt.s32.f32 %v98
    %v107 = vcvt.s32.f32 %v99
    %v108 = vcvt.s32.f32 %v100
    %v109 = vmul.f32 %v101, 2.3841858e-07
    %v110 = vmul.f32 %v102, 2.3841858e-07
    %v111 = vmul.f32 %v103, 2.3841858e-07
    %v112 = vmul.f32 %v104, 2.3841858e-07
    %v113 = vmul.f32 %v105, 2.3841858e-07
    %v114 = vmul.f32 %v106, 2.3841858e-07
    %v115 = vmul.f32 %v107, 2.3841858e-07
    %v116 = vmul.f32 %v108, 2.3841858e-07
    %v117 = vsub.f32 %v109, 0.9999999
    %v118 = vsub.f32 %v110, 0.9999999
    %v119 = vsub.f32 %v111, 0.9999999
    %v120 = vsub.f32 %v112, 0.9999999
    %v121 = vsub.f32 %v113, 0.9999999
    %v122 = vsub.f32 %v114, 0.9999999
    %v123 = vsub.f32 %v115, 0.9999999
    %v124 = vsub.f32 %v116, 0.9999999
    %v125 = vsub.f32 1.0, %v117
    %v126 = vsub.f32 1.0, %v118
    %v127 = vsub.f32 1.0, %v119
    %v128 = vsub.f32 1.0, %v120
    %v129 = vsub.f32 1.0, %v121
    %v130 = vsub.f32 1.0, %v122
    %v131 = vsub.f32 1.0, %v123
    %v132 = vsub.f32 1.0, %v124
    %v133 = vadd.f32 %v117, 1.0
    %v134 = vadd.f32 %v118, 1.0
    %v135 = vadd.f32 %v119, 1.0
    %v136 = vadd.f32 %v120, 1.0
    %v137 = vadd.f32 %v121, 1.0
    %v138 = vadd.f32 %v122, 1.0
    %v139 = vadd.f32 %v123, 1.0
    %v140 = vadd.f32 %v124, 1.0
    %v141 = vmul.f32 %v125, %v133
    %v142 = vmul.f32 %v126, %v134
    %v143 = vmul.f32 %v127, %v135
    %v144 = vmul.f32 %v128, %v136
    %v145 = vmul.f32 %v129, %v137
    %v146 = vmul.f32 %v130, %v138
    %v147 = vmul.f32 %v131, %v139
    %v148 = vmul.f32 %v132, %v140
    %v149 = vlog2.pop %v141
    %v150 = vmul.f32 %v149, 0.6931472
    %v151 = vlog2.pop %v142
    %v152 = vmul.f32 %v151, 0.6931472
    %v153 = vlog2.pop %v143
    %v154 = vmul.f32 %v153, 0.6931472
    %v155 = vlog2.pop %v144
    %v156 = vmul.f32 %v155, 0.6931472
    %v157 = vlog2.pop %v145
    %v158 = vmul.f32 %v157, 0.6931472
    %v159 = vlog2.pop %v146
    %v160 = vmul.f32 %v159, 0.6931472
    %v161 = vlog2.pop %v147
    %v162 = vmul.f32 %v161, 0.6931472
    %v163 = vlog2.pop %v148
    %v164 = vmul.f32 %v163, 0.6931472
    %v165 = vsub.f32 0.0, %v150
    %v166 = vsub.f32 0.0, %v152
    %v167 = vsub.f32 0.0, %v154
    %v168 = vsub.f32 0.0, %v156
    %v169 = vsub.f32 0.0, %v158
    %v170 = vsub.f32 0.0, %v160
    %v171 = vsub.f32 0.0, %v162
    %v172 = vsub.f32 0.0, %v164
    %v173 = vmin.f32 %v165, 4.5
    %v174 = vmin.f32 %v166, 4.5
    %v175 = vmin.f32 %v167, 4.5
    %v176 = vmin.f32 %v168, 4.5
    %v177 = vmin.f32 %v169, 4.5
    %v178 = vmin.f32 %v170, 4.5
    %v179 = vmin.f32 %v171, 4.5
    %v180 = vmin.f32 %v172, 4.5
    %v181 = vsub.f32 %v173, 2.5
    %v182 = vsub.f32 %v174, 2.5
    %v183 = vsub.f32 %v175, 2.5
    %v184 = vsub.f32 %v176, 2.5
    %v185 = vsub.f32 %v177, 2.5
    %v186 = vsub.f32 %v178, 2.5
    %v187 = vsub.f32 %v179, 2.5
    %v188 = vsub.f32 %v180, 2.5
    %v189 = vmul.f32 %v181, 0.00021858087
    %v190 = vmul.f32 %v182, 0.00021858087
    %v191 = vmul.f32 %v183, 0.00021858087
    %v192 = vmul.f32 %v184, 0.00021858087
    %v193 = vmul.f32 %v185, 0.00021858087
    %v194 = vmul.f32 %v186, 0.00021858087
    %v195 = vmul.f32 %v187, 0.00021858087
    %v196 = vmul.f32 %v188, 0.00021858087
    %v197 = vadd.f32 %v189, -0.001253725
    %v198 = vadd.f32 %v190, -0.001253725
    %v199 = vadd.f32 %v191, -0.001253725
    %v200 = vadd.f32 %v192, -0.001253725
    %v201 = vadd.f32 %v193, -0.001253725
    %v202 = vadd.f32 %v194, -0.001253725
    %v203 = vadd.f32 %v195, -0.001253725
    %v204 = vadd.f32 %v196, -0.001253725
    %v205 = vmul.f32 %v197, %v181
    %v206 = vmul.f32 %v198, %v182
    %v207 = vmul.f32 %v199, %v183
    %v208 = vmul.f32 %v200, %v184
    %v209 = vmul.f32 %v201, %v185
    %v210 = vmul.f32 %v202, %v186
    %v211 = vmul.f32 %v203, %v187
    %v212 = vmul.f32 %v204, %v188
    %v213 = vadd.f32 %v205, -0.0041776816
    %v214 = vadd.f32 %v206, -0.0041776816
    %v215 = vadd.f32 %v207, -0.0041776816
    %v216 = vadd.f32 %v208, -0.0041776816
    %v217 = vadd.f32 %v209, -0.0041776816
    %v218 = vadd.f32 %v210, -0.0041776816
    %v219 = vadd.f32 %v211, -0.0041776816
    %v220 = vadd.f32 %v212, -0.0041776816
    %v221 = vmul.f32 %v213, %v181
    %v222 = vmul.f32 %v214, %v182
    %v223 = vmul.f32 %v215, %v183
    %v224 = vmul.f32 %v216, %v184
    %v225 = vmul.f32 %v217, %v185
    %v226 = vmul.f32 %v218, %v186
    %v227 = vmul.f32 %v219, %v187
    %v228 = vmul.f32 %v220, %v188
    %v229 = vadd.f32 %v221, 0.24664073
    %v230 = vadd.f32 %v222, 0.24664073
    %v231 = vadd.f32 %v223, 0.24664073
    %v232 = vadd.f32 %v224, 0.24664073
    %v233 = vadd.f32 %v225, 0.24664073
    %v234 = vadd.f32 %v226, 0.24664073
    %v235 = vadd.f32 %v227, 0.24664073
    %v236 = vadd.f32 %v228, 0.24664073
    %v237 = vmul.f32 %v229, %v181
    %v238 = vmul.f32 %v230, %v182
    %v239 = vmul.f32 %v231, %v183
    %v240 = vmul.f32 %v232, %v184
    %v241 = vmul.f32 %v233, %v185
    %v242 = vmul.f32 %v234, %v186
    %v243 = vmul.f32 %v235, %v187
    %v244 = vmul.f32 %v236, %v188
    %v245 = vadd.f32 %v237, 1.5014094
    %v246 = vadd.f32 %v238, 1.5014094
    %v247 = vadd.f32 %v239, 1.5014094
    %v248 = vadd.f32 %v240, 1.5014094
    %v249 = vadd.f32 %v241, 1.5014094
    %v250 = vadd.f32 %v242, 1.5014094
    %v251 = vadd.f32 %v243, 1.5014094
    %v252 = vadd.f32 %v244, 1.5014094
    %v253 = vmul.f32 %v117, 0.14142136
    %v254 = vmul.f32 %v118, 0.14142136
    %v255 = vmul.f32 %v119, 0.14142136
    %v256 = vmul.f32 %v120, 0.14142136
    %v257 = vmul.f32 %v121, 0.14142136
    %v258 = vmul.f32 %v122, 0.14142136
    %v259 = vmul.f32 %v123, 0.14142136
    %v260 = vmul.f32 %v124, 0.14142136
    %v261 = vmul.f32 %v253, %v245
    %v262 = vmul.f32 %v254, %v246
    %v263 = vmul.f32 %v255, %v247
    %v264 = vmul.f32 %v256, %v248
    %v265 = vmul.f32 %v257, %v249
    %v266 = vmul.f32 %v258, %v250
    %v267 = vmul.f32 %v259, %v251
    %v268 = vmul.f32 %v260, %v252
    %v269 = vld [vmem:[#allocation4] sm:$0xff]
    %v270 = vld [vmem:[#allocation4 + $0x8] sm:$0xff]
    %v279 = vcombine.low %v261, %v262
    %v280 = vcombine.low %v263, %v264
    %v282 = vunpack.c.l.s4 1983009808
    %v283 = vunpack.c.0.s8 %v282
    %v284 = vlaneseq
    %v285 = vshrl.u32 %v284, 7
    %v286 = vsub.s32 %v283, %v285
    %v287 = vrot.slane %v279, %v286
    %v289 = vunpack.c.l.s4 1983009808
    %v290 = vunpack.c.0.s8 %v289
    %v291 = vlaneseq
    %v292 = vshrl.u32 %v291, 7
    %v293 = vsub.s32 %v290, %v292
    %v294 = vrot.slane %v280, %v293
    %v295 = vcombine.low %v287, %v294
    %v296 = vcombine.low %v265, %v266
    %v297 = vcombine.low %v267, %v268
    %v299 = vunpack.c.l.s4 1983009808
    %v300 = vunpack.c.0.s8 %v299
    %v301 = vlaneseq
    %v302 = vshrl.u32 %v301, 7
    %v303 = vsub.s32 %v300, %v302
    %v304 = vrot.slane %v296, %v303
    %v306 = vunpack.c.l.s4 1983009808
    %v307 = vunpack.c.0.s8 %v306
    %v308 = vlaneseq
    %v309 = vshrl.u32 %v308, 7
    %v310 = vsub.s32 %v307, %v309
    %v311 = vrot.slane %v297, %v310
    %v312 = vcombine.low %v304, %v311
    %v315 = vadd.f32 %v269, %v295
    %v316 = vadd.f32 %v270, %v312
    %317 = vst [vmem:[#allocation7] sm:$0xff] %v315
    %318 = vst [vmem:[#allocation7 + $0x8] sm:$0xff] %v316
    // Predicated region
    $region10: #{tpu_custom_call.1} parent=1 // pred_check
      _
    $region11: #{tpu_custom_call.1} parent=1 // pred_check_branch
      %320 = sbr.rel (0) target = $region13
    $region12: #{tpu_custom_call.1} parent=1 // pred_region
      %s322 = ssub.s32 256, 256
      %323 = vsyncadd [#allocation6], %s322
      %s325 = sshll.u32 [#allocation7], 4
      %s326 = int_to_ptr.vmem [resolvable:$true] %s325
      %328 = dma.vmem_to_hbm [thread:$0]  %s326, 256, %s2, [#allocation6]
    $region13: #{tpu_custom_call.1} parent=1 // pred_fallthru
      _
    // Predicated region
    $region14: #{tpu_custom_call.1} parent=1 // pred_check
      _
    $region15: #{tpu_custom_call.1} parent=1 // pred_check_branch
      %330 = sbr.rel (0) target = $region17
    $region16: #{tpu_custom_call.1} parent=1 // pred_region
      %331 = dma.done [#allocation6], 256
    $region17: #{tpu_custom_call.1} parent=1 // pred_fallthru
      _
    %332 = vsyncpa [#allocation5], 1
    %333 = vsyncpa [#allocation6], 1

</llo_original>
